<compile_context>
chip_gen: v5e
topology: v5e:2x2
jax: 0.10.0
libtpu: 0.0.40
codegen_flags: <defaults>
</compile_context>

<pallas_src>
import functools

import numpy as np
import jax
import jax.numpy as jnp
from jax.experimental import pallas as pl
from jax.experimental.pallas import tpu as pltpu


def double_conv_kernel(x_ref, wb1_ref, wb2_ref, p1_ref, pt1_ref, p2_ref,
                       pt2_ref, gb1_ref, gb2_ref, out_ref, *,
                       img_h, inv_count, eps):
    """Whole DoubleConv forward, all operands resident in VMEM (toy shapes).

    x_ref   : (M, W*Cin)     f32  flat NHWC input, M = N*H  (lane-dense)
    wb*_ref : (3*W*Ci, W*Co) bf16 ky-stacked row-banded conv weights
    p*_ref  : (W*C, C)       f32  per-channel one-hot gather matrix
    pt*_ref : (C, W*C)       f32  its transpose (per-channel broadcast)
    gb*_ref : (2, C)         f32  packed [gamma; beta]
    out_ref : (M, W*Cout)    f32  lane-dense output slab
    """
    m = x_ref.shape[0]

    # Per-image vertical boundary masks (y==0 / y==H-1), computed once and
    # reused by both convs.
    y = jax.lax.broadcasted_iota(jnp.int32, (m, 1), 0) % img_h
    has_up = y != 0            # a row above exists inside the same image
    has_dn = y != (img_h - 1)  # a row below exists inside the same image

    def conv3x3(a, wb_ref):
        # Vertical halo via XLU sublane rotation + per-image zero mask (VPU)
        # instead of MxM shift matmuls.  shift = m-1 == shift -1 for a rotation;
        # the wrapped rows land on image-boundary rows and are zeroed by masks.
        up = jnp.where(has_up, pltpu.roll(a, 1, axis=0), 0.0)
        dn = jnp.where(has_dn, pltpu.roll(a, m - 1, axis=0), 0.0)
        # Single wide-K MXU matmul: [up | centre | down] against the ky-stacked
        # row-banded weights (horizontal taps + zero padding folded into the
        # band structure).  bf16 operands, f32 accumulation.
        lhs = jnp.concatenate([up, a, dn], axis=1).astype(jnp.bfloat16)
        return jnp.dot(lhs, wb_ref[...], preferred_element_type=jnp.float32)

    def bn_relu(acc, p_ref, pt_ref, gb_ref):
        # One-pass batch stats (biased variance == PyTorch train mode), all in
        # f32, batched: one (2, W*C) x (W*C, C) gather matmul ...
        moments = jnp.concatenate(
            [jnp.sum(acc, axis=0, keepdims=True),
             jnp.sum(acc * acc, axis=0, keepdims=True)], axis=0)      # (2, W*C)
        ch = jnp.dot(moments, p_ref[...],
                     preferred_element_type=jnp.float32) * inv_count  # (2, C)
        mean = ch[0:1, :]
        var = ch[1:2, :] - mean * mean
        scale = gb_ref[0:1, :] * jax.lax.rsqrt(var + eps)             # (1, C)
        shift = gb_ref[1:2, :] - mean * scale                         # (1, C)
        # ... and one (2, C) x (C, W*C) broadcast matmul back onto lanes.
        ss = jnp.dot(jnp.concatenate([scale, shift], axis=0), pt_ref[...],
                     preferred_element_type=jnp.float32)              # (2, W*C)
        return jnp.maximum(acc * ss[0:1, :] + ss[1:2, :], 0.0)

    x = x_ref[...]
    y1 = bn_relu(conv3x3(x, wb1_ref), p1_ref, pt1_ref, gb1_ref)
    y2 = bn_relu(conv3x3(y1, wb2_ref), p2_ref, pt2_ref, gb2_ref)
    out_ref[...] = y2          # single unmasked lane-dense (M, W*Cout) store


# ----------------------------------------------------------------------------
# Host-side (trace-time) constant construction: weight banding and channel
# gather/broadcast matrices.  Tiny, parameter-only layout transforms done once
# per call (analogous to weight packing).
# ----------------------------------------------------------------------------
def _band_weight(w_hwio, width):
    """(3,3,Ci,Co) HWIO -> (3*width*Ci, width*Co) ky-stacked banded matrix (bf16)."""
    kh, kw, ci, co = w_hwio.shape
    E = np.zeros((kw, width, width), np.float32)
    for kx in range(kw):
        for x in range(width):
            xi = x + kx - 1          # input column feeding output column x
            if 0 <= xi < width:      # out-of-range == zero padding (omitted)
                E[kx, xi, x] = 1.0
    wb = jnp.einsum('kpx,ykio->ypixo', jnp.asarray(E),
                    w_hwio.astype(jnp.float32))
    return wb.reshape(kh * width * ci, width * co).astype(jnp.bfloat16)


def _channel_pool(width, c):
    """One-hot (width*c, c) channel gather matrix and its transpose.

    Kept in f32 so the BatchNorm statistic matmuls stay full precision.
    """
    p = np.tile(np.eye(c, dtype=np.float32), (width, 1))
    return jnp.asarray(p), jnp.asarray(p.T)


def double_conv_pallas(x_nchw, w1, w2, g1, b1, g2, b2, eps=1e-5):
    """x_nchw: (N, Cin, H, W) like PyTorch; returns (N, Cout, H, W)."""
    N, Cin, H, W = x_nchw.shape
    Cmid = w1.shape[-1]
    Cout = w2.shape[-1]
    M = N * H

    # The lane-dense design assumes full 128-lane activation slabs; guard it.
    assert (W * Cmid) % 128 == 0 and (W * Cout) % 128 == 0, (
        f"double_conv_pallas expects W*Cmid and W*Cout to be multiples of "
        f"128 lanes (got {W * Cmid}, {W * Cout})")

    # NCHW -> NHWC -> lane-dense flat slab (N*H, W*Cin).  No jnp.pad anywhere.
    x_flat = jnp.transpose(x_nchw.astype(jnp.float32),
                           (0, 2, 3, 1)).reshape(M, W * Cin)

    wb1 = _band_weight(w1, W)                       # (3*W*Cin,  W*Cmid) bf16
    wb2 = _band_weight(w2, W)                       # (3*W*Cmid, W*Cout) bf16
    p1, pt1 = _channel_pool(W, Cmid)
    p2, pt2 = _channel_pool(W, Cout)
    gb1 = jnp.stack([g1, b1]).astype(jnp.float32)   # (2, Cmid)
    gb2 = jnp.stack([g2, b2]).astype(jnp.float32)   # (2, Cout)

    out_flat = pl.pallas_call(
        functools.partial(double_conv_kernel, img_h=H,
                          inv_count=1.0 / float(N * H * W), eps=eps),
        out_shape=jax.ShapeDtypeStruct((M, W * Cout), jnp.float32),
        in_specs=[pl.BlockSpec(memory_space=pltpu.MemorySpace.VMEM)] * 9,
        out_specs=pl.BlockSpec(memory_space=pltpu.MemorySpace.VMEM),
    )(x_flat, wb1, wb2, p1, pt1, p2, pt2, gb1, gb2)

    out = out_flat.reshape(N, H, W, Cout)
    return jnp.transpose(out, (0, 3, 1, 2))         # back to NCHW


def double_conv_ref(x_nchw, w1, w2, g1, b1, g2, b2, eps=1e-5):
    """Pure-JAX reference matching PyTorch training-mode forward."""
    x = jnp.transpose(x_nchw, (0, 2, 3, 1)).astype(jnp.float32)

    def conv_bn_relu(x, w, g, b):
        y = jax.lax.conv_general_dilated(
            x, w, window_strides=(1, 1), padding="SAME",
            dimension_numbers=("NHWC", "HWIO", "NHWC"),
            precision=jax.lax.Precision.HIGHEST)
        mean = jnp.mean(y, axis=(0, 1, 2), keepdims=True)
        var = jnp.mean((y - mean) ** 2, axis=(0, 1, 2), keepdims=True)
        y = (y - mean) * jax.lax.rsqrt(var + eps) * g.reshape(1, 1, 1, -1) \
            + b.reshape(1, 1, 1, -1)
        return jnp.maximum(y, 0.0)

    y = conv_bn_relu(x, w1, g1, b1)
    y = conv_bn_relu(y, w2, g2, b2)
    return jnp.transpose(y, (0, 3, 1, 2))


if __name__ == "__main__":
    # Small shapes consistent with the module: N=2, Cin=4, H=W=16,
    # mid_channels = out_channels = 8.
    N, Cin, H, W = 2, 4, 16, 16
    Cmid, Cout = 8, 8

    key = jax.random.PRNGKey(0)
    kx, kw1, kw2, kg1, kb1, kg2, kb2 = jax.random.split(key, 7)

    x = jax.random.normal(kx, (N, Cin, H, W), jnp.float32)
    # Conv weights (HWIO), deterministic synthetic init.
    w1 = 0.1 * jax.random.normal(kw1, (3, 3, Cin, Cmid), jnp.float32)
    w2 = 0.1 * jax.random.normal(kw2, (3, 3, Cmid, Cout), jnp.float32)
    # BatchNorm affine params (nontrivial, deterministic).
    g1 = 1.0 + 0.1 * jax.random.normal(kg1, (Cmid,), jnp.float32)
    b1 = 0.1 * jax.random.normal(kb1, (Cmid,), jnp.float32)
    g2 = 1.0 + 0.1 * jax.random.normal(kg2, (Cout,), jnp.float32)
    b2 = 0.1 * jax.random.normal(kb2, (Cout,), jnp.float32)

    out = double_conv_pallas(x, w1, w2, g1, b1, g2, b2)
    out = jax.block_until_ready(out)

    ref = double_conv_ref(x, w1, w2, g1, b1, g2, b2)
    assert out.shape == (N, Cout, H, W)
    # bf16 MXU operands (f32 accumulation + f32 BN statistics): tolerance
    # loosened from the all-f32 version's 1e-4 accordingly.
    assert jnp.allclose(out, ref, atol=5e-2, rtol=5e-2), \
        f"max abs err {jnp.max(jnp.abs(out - ref))}"

    print("KERNEL_OK")
</pallas_src>

<mosaic_0001>
module attributes {stable_mosaic.version = 11 : i64} {
  func.func @double_conv_kernel(%arg0: memref<32x64xf32, #tpu.memory_space<vmem>>, %arg1: memref<192x128xbf16, #tpu.memory_space<vmem>>, %arg2: memref<384x128xbf16, #tpu.memory_space<vmem>>, %arg3: memref<128x8xf32, #tpu.memory_space<vmem>>, %arg4: memref<8x128xf32, #tpu.memory_space<vmem>>, %arg5: memref<128x8xf32, #tpu.memory_space<vmem>>, %arg6: memref<8x128xf32, #tpu.memory_space<vmem>>, %arg7: memref<2x8xf32, #tpu.memory_space<vmem>>, %arg8: memref<2x8xf32, #tpu.memory_space<vmem>>, %arg9: memref<32x128xf32, #tpu.memory_space<vmem>>) attributes {dimension_semantics = [], scalar_prefetch = 0 : i64, scratch_operands = 0 : i64, tpu.core_type = #tpu.core_type<tc>} {
    %0 = tpu.iota {dimensions = array<i32: 0>} : vector<32x1xi32>
    %c16_i32 = arith.constant 16 : i32
    %c0_i32 = arith.constant 0 : i32
    %1 = arith.cmpi eq, %c16_i32, %c0_i32 : i32
    %c1_i32 = arith.constant 1 : i32
    %2 = arith.select %1, %c1_i32, %c16_i32 : i32
    %3 = vector.broadcast %2 : i32 to vector<32x1xi32>
    %4 = arith.remsi %0, %3 : vector<32x1xi32>
    %c0_i32_0 = arith.constant 0 : i32
    %5 = vector.broadcast %c0_i32_0 : i32 to vector<32x1xi32>
    %6 = arith.cmpi ne, %4, %5 : vector<32x1xi32>
    %c0_i32_1 = arith.constant 0 : i32
    %7 = vector.broadcast %c0_i32_1 : i32 to vector<32x1xi32>
    %8 = arith.cmpi slt, %4, %7 : vector<32x1xi32>
    %c0_i32_2 = arith.constant 0 : i32
    %9 = arith.cmpi slt, %2, %c0_i32_2 : i32
    %10 = vector.broadcast %9 : i1 to vector<32x1xi1>
    %11 = vector.broadcast %10 : vector<32x1xi1> to vector<32x1xi1>
    %12 = arith.xori %8, %11 : vector<32x1xi1>
    %13 = arith.andi %12, %6 : vector<32x1xi1>
    %14 = vector.broadcast %2 : i32 to vector<32x1xi32>
    %15 = arith.addi %4, %14 : vector<32x1xi32>
    %16 = arith.select %13, %15, %4 : vector<32x1xi1>, vector<32x1xi32>
    %c0_i32_3 = arith.constant 0 : i32
    %17 = vector.broadcast %c0_i32_3 : i32 to vector<32x1xi32>
    %18 = arith.cmpi ne, %16, %17 : vector<32x1xi32>
    %c15_i32 = arith.constant 15 : i32
    %19 = vector.broadcast %c15_i32 : i32 to vector<32x1xi32>
    %20 = arith.cmpi ne, %16, %19 : vector<32x1xi32>
    %c0 = arith.constant 0 : index
    %c0_4 = arith.constant 0 : index
    %21 = vector.load %arg0[%c0, %c0_4] : memref<32x64xf32, #tpu.memory_space<vmem>>, vector<32x64xf32>
    %c1_i32_5 = arith.constant 1 : i32
    %22 = tpu.dynamic_rotate %21 by %c1_i32_5 dim 0 : vector<32x64xf32>, i32 -> vector<32x64xf32>
    %cst = arith.constant 0.000000e+00 : f32
    %23 = vector.shape_cast %18 : vector<32x1xi1> to vector<32x1xi1>
    %24 = vector.broadcast %23 : vector<32x1xi1> to vector<32x64xi1>
    %25 = vector.broadcast %cst : f32 to vector<32x64xf32>
    %26 = arith.select %24, %22, %25 : vector<32x64xi1>, vector<32x64xf32>
    %c31_i32 = arith.constant 31 : i32
    %27 = tpu.dynamic_rotate %21 by %c31_i32 dim 0 : vector<32x64xf32>, i32 -> vector<32x64xf32>
    %cst_6 = arith.constant 0.000000e+00 : f32
    %28 = vector.shape_cast %20 : vector<32x1xi1> to vector<32x1xi1>
    %29 = vector.broadcast %28 : vector<32x1xi1> to vector<32x64xi1>
    %30 = vector.broadcast %cst_6 : f32 to vector<32x64xf32>
    %31 = arith.select %29, %27, %30 : vector<32x64xi1>, vector<32x64xf32>
    %32 = tpu.concatenate %26, %21, %31 in 1 : vector<32x64xf32>, vector<32x64xf32>, vector<32x64xf32> -> vector<32x192xf32>
    %33 = arith.truncf %32 : vector<32x192xf32> to vector<32x192xbf16>
    %c0_7 = arith.constant 0 : index
    %c0_8 = arith.constant 0 : index
    %34 = vector.load %arg1[%c0_7, %c0_8] : memref<192x128xbf16, #tpu.memory_space<vmem>>, vector<192x128xbf16>
    %cst_9 = arith.constant dense<0.000000e+00> : vector<32x128xf32>
    %35 = tpu.matmul %33, %34, %cst_9 {dimension_numbers = #tpu.dot_dimension_numbers<[1], [0], [0], [1], [0, 0, 1, 1], [], []>} : vector<32x192xbf16>, vector<192x128xbf16>, vector<32x128xf32> -> vector<32x128xf32>
    %cst_10 = arith.constant dense<0.000000e+00> : vector<128xf32>
    %36 = vector.multi_reduction <add>, %35, %cst_10 [0] : vector<32x128xf32> to vector<128xf32>
    %37 = vector.shape_cast %36 : vector<128xf32> to vector<1x128xf32>
    %38 = arith.mulf %35, %35 : vector<32x128xf32>
    %cst_11 = arith.constant dense<0.000000e+00> : vector<128xf32>
    %39 = vector.multi_reduction <add>, %38, %cst_11 [0] : vector<32x128xf32> to vector<128xf32>
    %40 = vector.shape_cast %39 : vector<128xf32> to vector<1x128xf32>
    %41 = tpu.concatenate %37, %40 in 0 : vector<1x128xf32>, vector<1x128xf32> -> vector<2x128xf32>
    %c0_12 = arith.constant 0 : index
    %c0_13 = arith.constant 0 : index
    %42 = vector.load %arg3[%c0_12, %c0_13] : memref<128x8xf32, #tpu.memory_space<vmem>>, vector<128x8xf32>
    %cst_14 = arith.constant dense<0.000000e+00> : vector<2x8xf32>
    %43 = tpu.matmul %41, %42, %cst_14 {dimension_numbers = #tpu.dot_dimension_numbers<[1], [0], [0], [1], [0, 0, 1, 1], [], []>} : vector<2x128xf32>, vector<128x8xf32>, vector<2x8xf32> -> vector<2x8xf32>
    %cst_15 = arith.constant 0.001953125 : f32
    %44 = vector.broadcast %cst_15 : f32 to vector<2x8xf32>
    %45 = arith.mulf %43, %44 : vector<2x8xf32>
    %46 = vector.extract_strided_slice %45 {offsets = [0, 0], sizes = [1, 8], strides = [1, 1]} : vector<2x8xf32> to vector<1x8xf32>
    %47 = vector.extract_strided_slice %45 {offsets = [1, 0], sizes = [1, 8], strides = [1, 1]} : vector<2x8xf32> to vector<1x8xf32>
    %48 = arith.mulf %46, %46 : vector<1x8xf32>
    %49 = arith.subf %47, %48 : vector<1x8xf32>
    %c0_16 = arith.constant 0 : index
    %c0_17 = arith.constant 0 : index
    %50 = vector.load %arg7[%c0_16, %c0_17] : memref<2x8xf32, #tpu.memory_space<vmem>>, vector<1x8xf32>
    %cst_18 = arith.constant 9.99999974E-6 : f32
    %51 = vector.broadcast %cst_18 : f32 to vector<1x8xf32>
    %52 = arith.addf %49, %51 : vector<1x8xf32>
    %53 = math.rsqrt %52 : vector<1x8xf32>
    %54 = arith.mulf %50, %53 : vector<1x8xf32>
    %c1 = arith.constant 1 : index
    %c0_19 = arith.constant 0 : index
    %55 = vector.load %arg7[%c1, %c0_19] : memref<2x8xf32, #tpu.memory_space<vmem>>, vector<1x8xf32>
    %56 = arith.mulf %46, %54 : vector<1x8xf32>
    %57 = arith.subf %55, %56 : vector<1x8xf32>
    %58 = tpu.concatenate %54, %57 in 0 : vector<1x8xf32>, vector<1x8xf32> -> vector<2x8xf32>
    %c0_20 = arith.constant 0 : index
    %c0_21 = arith.constant 0 : index
    %59 = vector.load %arg4[%c0_20, %c0_21] : memref<8x128xf32, #tpu.memory_space<vmem>>, vector<8x128xf32>
    %cst_22 = arith.constant dense<0.000000e+00> : vector<2x128xf32>
    %60 = tpu.matmul %58, %59, %cst_22 {dimension_numbers = #tpu.dot_dimension_numbers<[1], [0], [0], [1], [0, 0, 1, 1], [], []>} : vector<2x8xf32>, vector<8x128xf32>, vector<2x128xf32> -> vector<2x128xf32>
    %61 = vector.extract_strided_slice %60 {offsets = [0, 0], sizes = [1, 128], strides = [1, 1]} : vector<2x128xf32> to vector<1x128xf32>
    %62 = vector.broadcast %61 : vector<1x128xf32> to vector<32x128xf32>
    %63 = arith.mulf %35, %62 : vector<32x128xf32>
    %64 = vector.extract_strided_slice %60 {offsets = [1, 0], sizes = [1, 128], strides = [1, 1]} : vector<2x128xf32> to vector<1x128xf32>
    %65 = vector.broadcast %64 : vector<1x128xf32> to vector<32x128xf32>
    %66 = arith.addf %63, %65 : vector<32x128xf32>
    %cst_23 = arith.constant 0.000000e+00 : f32
    %67 = vector.broadcast %cst_23 : f32 to vector<32x128xf32>
    %68 = arith.maximumf %66, %67 : vector<32x128xf32>
    %c1_i32_24 = arith.constant 1 : i32
    %69 = tpu.dynamic_rotate %68 by %c1_i32_24 dim 0 : vector<32x128xf32>, i32 -> vector<32x128xf32>
    %cst_25 = arith.constant 0.000000e+00 : f32
    %70 = vector.shape_cast %18 : vector<32x1xi1> to vector<32x1xi1>
    %71 = vector.broadcast %70 : vector<32x1xi1> to vector<32x128xi1>
    %72 = vector.broadcast %cst_25 : f32 to vector<32x128xf32>
    %73 = arith.select %71, %69, %72 : vector<32x128xi1>, vector<32x128xf32>
    %c31_i32_26 = arith.constant 31 : i32
    %74 = tpu.dynamic_rotate %68 by %c31_i32_26 dim 0 : vector<32x128xf32>, i32 -> vector<32x128xf32>
    %cst_27 = arith.constant 0.000000e+00 : f32
    %75 = vector.shape_cast %20 : vector<32x1xi1> to vector<32x1xi1>
    %76 = vector.broadcast %75 : vector<32x1xi1> to vector<32x128xi1>
    %77 = vector.broadcast %cst_27 : f32 to vector<32x128xf32>
    %78 = arith.select %76, %74, %77 : vector<32x128xi1>, vector<32x128xf32>
    %79 = tpu.concatenate %73, %68, %78 in 1 : vector<32x128xf32>, vector<32x128xf32>, vector<32x128xf32> -> vector<32x384xf32>
    %80 = arith.truncf %79 : vector<32x384xf32> to vector<32x384xbf16>
    %c0_28 = arith.constant 0 : index
    %c0_29 = arith.constant 0 : index
    %81 = vector.load %arg2[%c0_28, %c0_29] : memref<384x128xbf16, #tpu.memory_space<vmem>>, vector<384x128xbf16>
    %cst_30 = arith.constant dense<0.000000e+00> : vector<32x128xf32>
    %82 = tpu.matmul %80, %81, %cst_30 {dimension_numbers = #tpu.dot_dimension_numbers<[1], [0], [0], [1], [0, 0, 1, 1], [], []>} : vector<32x384xbf16>, vector<384x128xbf16>, vector<32x128xf32> -> vector<32x128xf32>
    %cst_31 = arith.constant dense<0.000000e+00> : vector<128xf32>
    %83 = vector.multi_reduction <add>, %82, %cst_31 [0] : vector<32x128xf32> to vector<128xf32>
    %84 = vector.shape_cast %83 : vector<128xf32> to vector<1x128xf32>
    %85 = arith.mulf %82, %82 : vector<32x128xf32>
    %cst_32 = arith.constant dense<0.000000e+00> : vector<128xf32>
    %86 = vector.multi_reduction <add>, %85, %cst_32 [0] : vector<32x128xf32> to vector<128xf32>
    %87 = vector.shape_cast %86 : vector<128xf32> to vector<1x128xf32>
    %88 = tpu.concatenate %84, %87 in 0 : vector<1x128xf32>, vector<1x128xf32> -> vector<2x128xf32>
    %c0_33 = arith.constant 0 : index
    %c0_34 = arith.constant 0 : index
    %89 = vector.load %arg5[%c0_33, %c0_34] : memref<128x8xf32, #tpu.memory_space<vmem>>, vector<128x8xf32>
    %cst_35 = arith.constant dense<0.000000e+00> : vector<2x8xf32>
    %90 = tpu.matmul %88, %89, %cst_35 {dimension_numbers = #tpu.dot_dimension_numbers<[1], [0], [0], [1], [0, 0, 1, 1], [], []>} : vector<2x128xf32>, vector<128x8xf32>, vector<2x8xf32> -> vector<2x8xf32>
    %cst_36 = arith.constant 0.001953125 : f32
    %91 = vector.broadcast %cst_36 : f32 to vector<2x8xf32>
    %92 = arith.mulf %90, %91 : vector<2x8xf32>
    %93 = vector.extract_strided_slice %92 {offsets = [0, 0], sizes = [1, 8], strides = [1, 1]} : vector<2x8xf32> to vector<1x8xf32>
    %94 = vector.extract_strided_slice %92 {offsets = [1, 0], sizes = [1, 8], strides = [1, 1]} : vector<2x8xf32> to vector<1x8xf32>
    %95 = arith.mulf %93, %93 : vector<1x8xf32>
    %96 = arith.subf %94, %95 : vector<1x8xf32>
    %c0_37 = arith.constant 0 : index
    %c0_38 = arith.constant 0 : index
    %97 = vector.load %arg8[%c0_37, %c0_38] : memref<2x8xf32, #tpu.memory_space<vmem>>, vector<1x8xf32>
    %cst_39 = arith.constant 9.99999974E-6 : f32
    %98 = vector.broadcast %cst_39 : f32 to vector<1x8xf32>
    %99 = arith.addf %96, %98 : vector<1x8xf32>
    %100 = math.rsqrt %99 : vector<1x8xf32>
    %101 = arith.mulf %97, %100 : vector<1x8xf32>
    %c1_40 = arith.constant 1 : index
    %c0_41 = arith.constant 0 : index
    %102 = vector.load %arg8[%c1_40, %c0_41] : memref<2x8xf32, #tpu.memory_space<vmem>>, vector<1x8xf32>
    %103 = arith.mulf %93, %101 : vector<1x8xf32>
    %104 = arith.subf %102, %103 : vector<1x8xf32>
    %105 = tpu.concatenate %101, %104 in 0 : vector<1x8xf32>, vector<1x8xf32> -> vector<2x8xf32>
    %c0_42 = arith.constant 0 : index
    %c0_43 = arith.constant 0 : index
    %106 = vector.load %arg6[%c0_42, %c0_43] : memref<8x128xf32, #tpu.memory_space<vmem>>, vector<8x128xf32>
    %cst_44 = arith.constant dense<0.000000e+00> : vector<2x128xf32>
    %107 = tpu.matmul %105, %106, %cst_44 {dimension_numbers = #tpu.dot_dimension_numbers<[1], [0], [0], [1], [0, 0, 1, 1], [], []>} : vector<2x8xf32>, vector<8x128xf32>, vector<2x128xf32> -> vector<2x128xf32>
    %108 = vector.extract_strided_slice %107 {offsets = [0, 0], sizes = [1, 128], strides = [1, 1]} : vector<2x128xf32> to vector<1x128xf32>
    %109 = vector.broadcast %108 : vector<1x128xf32> to vector<32x128xf32>
    %110 = arith.mulf %82, %109 : vector<32x128xf32>
    %111 = vector.extract_strided_slice %107 {offsets = [1, 0], sizes = [1, 128], strides = [1, 1]} : vector<2x128xf32> to vector<1x128xf32>
    %112 = vector.broadcast %111 : vector<1x128xf32> to vector<32x128xf32>
    %113 = arith.addf %110, %112 : vector<32x128xf32>
    %cst_45 = arith.constant 0.000000e+00 : f32
    %114 = vector.broadcast %cst_45 : f32 to vector<32x128xf32>
    %115 = arith.maximumf %113, %114 : vector<32x128xf32>
    %c0_46 = arith.constant 0 : index
    %c0_47 = arith.constant 0 : index
    %116 = vector.load %arg9[%c0_46, %c0_47] : memref<32x128xf32, #tpu.memory_space<vmem>>, vector<32x128xf32>
    tpu.vector_store %arg9[%c0_46, %c0_47], %115 {strides = array<i32>} : memref<32x128xf32, #tpu.memory_space<vmem>>, vector<32x128xf32>,
    return
  }
}

</mosaic_0001>

<llo_original>
// kernel: tpu_custom_call.1
$region0: #{tpu_custom_call.1}
  #allocation0 [shape = 'u32[]', space=smem, size = 0x4, offset = 0x4, fixed_abs, tag = 'smem constant byte address 0x4 - core index']
  #allocation1 [shape = 'u32[72,128]{1,0:T(1,128)}', space=vmem, size = 0x9000, scoped, tag = 'internal scratch']
  %s0 = inlined_call_operand.vmem [shape: f32[32,64], index: 0, kind: input, shape index: {}]
  %s1 = inlined_call_operand.hbm [shape: bf16[192,128], index: 1, kind: input, shape index: {}]
  %s2 = inlined_call_operand.vmem [shape: bf16[384,128], index: 2, kind: input, shape index: {}]
  %s3 = inlined_call_operand.vmem [shape: f32[128,8], index: 3, kind: input, shape index: {}]
  %s4 = inlined_call_operand.vmem [shape: f32[8,128], index: 4, kind: input, shape index: {}]
  %s5 = inlined_call_operand.vmem [shape: f32[128,8], index: 5, kind: input, shape index: {}]
  %s6 = inlined_call_operand.vmem [shape: f32[8,128], index: 6, kind: input, shape index: {}]
  %s7 = inlined_call_operand.vmem [shape: f32[2,8], index: 7, kind: input, shape index: {}]
  %s8 = inlined_call_operand.vmem [shape: f32[2,8], index: 8, kind: input, shape index: {}]
  %s9 = inlined_call_operand.hbm [shape: f32[32,128], index: 9, kind: output, shape index: {}]
  %s10 = sld [smem:[#allocation0]]
  $region50: #{tpu_custom_call.1} parent=0
    _
  %s12 = ssub.s32 1, %s10
  %s13 = scalar_select 0, %s12, %s10
  $region1: #{tpu_custom_call.1} parent=0
    #allocation2 [shape = 'u8[49152]{0}', space=vmem, size = 0xc000, scoped, tag = 'input window, operand 1, single buffered']
    #allocation3 [shape = 's32[1]{0}', space=sflag, size = 0x4, scoped, tag = 'scoped memory for tpu_custom_call.1']
    #allocation4 [shape = 's32[1]{0}', space=sflag, size = 0x4, scoped, tag = 'scoped memory for tpu_custom_call.1']
    #allocation5 [shape = 'u8[16384]{0}', space=vmem, size = 0x4000, scoped, tag = 'output window, operand 0, single buffered']
    %14 = vsyncpa [#allocation3], 0
    %15 = vsyncpa [#allocation4], 0
    // Predicated region
    $region2: #{tpu_custom_call.1} parent=1 // pred_check
      _
    $region3: #{tpu_custom_call.1} parent=1 // pred_check_branch
      %17 = sbr.rel (0) target = $region5
    $region4: #{tpu_custom_call.1} parent=1 // pred_region
      _
    $region5: #{tpu_custom_call.1} parent=1 // pred_fallthru
      _
    // Predicated region
    $region6: #{tpu_custom_call.1} parent=1 // pred_check
      _
    $region7: #{tpu_custom_call.1} parent=1 // pred_check_branch
      %19 = sbr.rel (0) target = $region9
    $region8: #{tpu_custom_call.1} parent=1 // pred_region
      %21 = vsyncadd [#allocation3], 0
      %s22 = sshll.u32 %s1, 4
      %s23 = int_to_ptr.hbm [resolvable:$true] %s22
      %s24 = sshll.u32 [#allocation2], 4
      %s25 = int_to_ptr.vmem [resolvable:$true] %s24
      %30 = dma.hbm_to_vmem [thread:$0]  %s23, 1536, %s25, [#allocation3], 64, 64, 4
    $region9: #{tpu_custom_call.1} parent=1 // pred_fallthru
      _
    // Predicated region
    $region10: #{tpu_custom_call.1} parent=1 // pred_check
      _
    $region11: #{tpu_custom_call.1} parent=1 // pred_check_branch
      %32 = sbr.rel (0) target = $region13
    $region12: #{tpu_custom_call.1} parent=1 // pred_region
      _
    $region13: #{tpu_custom_call.1} parent=1 // pred_fallthru
      _
    // Predicated region
    $region14: #{tpu_custom_call.1} parent=1 // pred_check
      _
    $region15: #{tpu_custom_call.1} parent=1 // pred_check_branch
      %34 = sbr.rel (0) target = $region17
    $region16: #{tpu_custom_call.1} parent=1 // pred_region
      _
    $region17: #{tpu_custom_call.1} parent=1 // pred_fallthru
      _
    // Predicated region
    $region18: #{tpu_custom_call.1} parent=1 // pred_check
      _
    $region19: #{tpu_custom_call.1} parent=1 // pred_check_branch
      %36 = sbr.rel (0) target = $region21
    $region20: #{tpu_custom_call.1} parent=1 // pred_region
      _
    $region21: #{tpu_custom_call.1} parent=1 // pred_fallthru
      _
    // Predicated region
    $region22: #{tpu_custom_call.1} parent=1 // pred_check
      _
    $region23: #{tpu_custom_call.1} parent=1 // pred_check_branch
      %38 = sbr.rel (0) target = $region25
    $region24: #{tpu_custom_call.1} parent=1 // pred_region
      _
    $region25: #{tpu_custom_call.1} parent=1 // pred_fallthru
      _
    // Predicated region
    $region26: #{tpu_custom_call.1} parent=1 // pred_check
      _
    $region27: #{tpu_custom_call.1} parent=1 // pred_check_branch
      %40 = sbr.rel (0) target = $region29
    $region28: #{tpu_custom_call.1} parent=1 // pred_region
      _
    $region29: #{tpu_custom_call.1} parent=1 // pred_fallthru
      _
    // Predicated region
    $region30: #{tpu_custom_call.1} parent=1 // pred_check
      _
    $region31: #{tpu_custom_call.1} parent=1 // pred_check_branch
      %42 = sbr.rel (0) target = $region33
    $region32: #{tpu_custom_call.1} parent=1 // pred_region
      _
    $region33: #{tpu_custom_call.1} parent=1 // pred_fallthru
      _
    // Predicated region
    $region34: #{tpu_custom_call.1} parent=1 // pred_check
      _
    $region35: #{tpu_custom_call.1} parent=1 // pred_check_branch
      %44 = sbr.rel (0) target = $region37
    $region36: #{tpu_custom_call.1} parent=1 // pred_region
      _
    $region37: #{tpu_custom_call.1} parent=1 // pred_fallthru
      _
    // Predicated region
    $region38: #{tpu_custom_call.1} parent=1 // pred_check
      _
    $region39: #{tpu_custom_call.1} parent=1 // pred_check_branch
      %46 = sbr.rel (0) target = $region41
    $region40: #{tpu_custom_call.1} parent=1 // pred_region
      %48 = dma.done [#allocation3], 1536
    $region41: #{tpu_custom_call.1} parent=1 // pred_fallthru
      _
    %v50 = vlaneseq
    %v51 = vshrl.u32 %v50, 7
    %v52 = vadd.s32 %v51, 8
    %v53 = vadd.s32 %v51, 16
    %v54 = vadd.s32 %v51, 24
    %vm55 = vcmp.lt.s32.totalorder %v51, 0
    %v56 = vsub.s32 0, %v51
    %v57 = vsel %vm55, %v56, %v51
    %v58 = vshrl.u32 %v57, 4
    %v59 = vand.u32 %v57, 15
    %v60 = vsub.s32 0, %v59
    %v61 = vsel %vm55, %v60, %v59
    %vm62 = vcmp.lt.s32.totalorder %v52, 0
    %v63 = vsub.s32 0, %v52
    %v64 = vsel %vm62, %v63, %v52
    %v65 = vshrl.u32 %v64, 4
    %v66 = vand.u32 %v64, 15
    %v67 = vsub.s32 0, %v66
    %v68 = vsel %vm62, %v67, %v66
    %vm69 = vcmp.lt.s32.totalorder %v53, 0
    %v70 = vsub.s32 0, %v53
    %v71 = vsel %vm69, %v70, %v53
    %v72 = vshrl.u32 %v71, 4
    %v73 = vand.u32 %v71, 15
    %v74 = vsub.s32 0, %v73
    %v75 = vsel %vm69, %v74, %v73
    %vm76 = vcmp.lt.s32.totalorder %v54, 0
    %v77 = vsub.s32 0, %v54
    %v78 = vsel %vm76, %v77, %v54
    %v79 = vshrl.u32 %v78, 4
    %v80 = vand.u32 %v78, 15
    %v81 = vsub.s32 0, %v80
    %v82 = vsel %vm76, %v81, %v80
    %vm83 = vcmp.ne.s32.totalorder %v61, 0
    %vm84 = vcmp.ne.s32.totalorder %v68, 0
    %vm85 = vcmp.ne.s32.totalorder %v75, 0
    %vm86 = vcmp.ne.s32.totalorder %v82, 0
    %vm87 = vcmp.lt.s32.totalorder %v61, 0
    %vm88 = vcmp.lt.s32.totalorder %v68, 0
    %vm89 = vcmp.lt.s32.totalorder %v75, 0
    %vm90 = vcmp.lt.s32.totalorder %v82, 0
    %vm91 = vmand %vm87, %vm83
    %vm92 = vmand %vm88, %vm84
    %vm93 = vmand %vm89, %vm85
    %vm94 = vmand %vm90, %vm86
    %v95 = vadd.s32 %v61, 16
    %v96 = vadd.s32 %v68, 16
    %v97 = vadd.s32 %v75, 16
    %v98 = vadd.s32 %v82, 16
    %v99 = vsel %vm91, %v95, %v61
    %v100 = vsel %vm92, %v96, %v68
    %v101 = vsel %vm93, %v97, %v75
    %v102 = vsel %vm94, %v98, %v82
    %vm103 = vcmp.ne.s32.totalorder %v99, 0
    %vm104 = vcmp.ne.s32.totalorder %v100, 0
    %vm105 = vcmp.ne.s32.totalorder %v101, 0
    %vm106 = vcmp.ne.s32.totalorder %v102, 0
    %vm107 = vcmp.ne.s32.totalorder %v99, 15
    %vm108 = vcmp.ne.s32.totalorder %v100, 15
    %vm109 = vcmp.ne.s32.totalorder %v101, 15
    %vm110 = vcmp.ne.s32.totalorder %v102, 15
    %v111 = vld [vmem:[%s0] sm:$0xff]
    %v112 = vld [vmem:[%s0 + $0x8] sm:$0xff]
    %v113 = vld [vmem:[%s0 + $0x10] sm:$0xff]
    %v114 = vld [vmem:[%s0 + $0x18] sm:$0xff]
    %v115 = vrot.slane %v111, 7
    %v116 = vrot.slane %v112, 7
    %v117 = vrot.slane %v113, 7
    %v118 = vrot.slane %v114, 7
    %vm119 = vcmp.lt.s32.totalorder %v51, 1
    %v120 = vsel %vm119, %v117, %v118
    %v121 = vsel %vm119, %v116, %v117
    %v122 = vsel %vm119, %v115, %v116
    %v123 = vsel %vm119, %v118, %v115
    %v124 = vsel %vm103, 1, 0
    %v125 = vsel %vm104, 1, 0
    %v126 = vsel %vm105, 1, 0
    %v127 = vsel %vm106, 1, 0
    %vm128 = vcmp.eq.s32.totalorder %v124, 1
    %vm129 = vcmp.eq.s32.totalorder %v125, 1
    %vm130 = vcmp.eq.s32.totalorder %v126, 1
    %vm131 = vcmp.eq.s32.totalorder %v127, 1
    %v132 = vsel %vm128, %v123, 0.0
    %v133 = vsel %vm129, %v122, 0.0
    %v134 = vsel %vm130, %v121, 0.0
    %v135 = vsel %vm131, %v120, 0.0
    %v136 = vrot.slane %v111, 1
    %v137 = vrot.slane %v112, 1
    %v138 = vrot.slane %v113, 1
    %v139 = vrot.slane %v114, 1
    %vm140 = vcmp.lt.s32.totalorder %v51, 7
    %v141 = vsel %vm140, %v138, %v139
    %v142 = vsel %vm140, %v137, %v138
    %v143 = vsel %vm140, %v136, %v137
    %v144 = vsel %vm140, %v139, %v136
    %v145 = vsel %vm107, 1, 0
    %v146 = vsel %vm108, 1, 0
    %v147 = vsel %vm109, 1, 0
    %v148 = vsel %vm110, 1, 0
    %vm149 = vcmp.eq.s32.totalorder %v145, 1
    %vm150 = vcmp.eq.s32.totalorder %v146, 1
    %vm151 = vcmp.eq.s32.totalorder %v147, 1
    %vm152 = vcmp.eq.s32.totalorder %v148, 1
    %v153 = vsel %vm149, %v143, 0.0
    %v154 = vsel %vm150, %v142, 0.0
    %v155 = vsel %vm151, %v141, 0.0
    %v156 = vsel %vm152, %v144, 0.0
    %161 = vrot.lane.b32.xlu0 %v111, 64
    %v162 = vpop.permute.xlu0 %161
    %163 = vrot.lane.b32.xlu0 %v112, 64
    %v164 = vpop.permute.xlu0 %163
    %165 = vrot.lane.b32.xlu0 %v113, 64
    %v166 = vpop.permute.xlu0 %165
    %167 = vrot.lane.b32.xlu0 %v114, 64
    %v168 = vpop.permute.xlu0 %167
    %vm173 = vcmask 523264
    %v174 = vsel %vm173, %v132, %v162
    %v175 = vsel %vm173, %v133, %v164
    %v176 = vsel %vm173, %v134, %v166
    %v177 = vsel %vm173, %v135, %v168
    %v178 = vpack.c.bf16 %v175, %v174
    %v179 = vpack.c.bf16 %v154, %v153
    %v180 = vpack.c.bf16 %v177, %v176
    %v181 = vpack.c.bf16 %v156, %v155
    %v182 = vld [vmem:[#allocation2] sm:$0xf]
    %v183 = vld [vmem:[#allocation2 + $0x4] sm:$0xf]
    %v184 = vld [vmem:[#allocation2 + $0x8] sm:$0xf]
    %v185 = vld [vmem:[#allocation2 + $0xc] sm:$0xf]
    %v186 = vld [vmem:[#allocation2 + $0x10] sm:$0xf]
    %v187 = vld [vmem:[#allocation2 + $0x14] sm:$0xf]
    %v188 = vld [vmem:[#allocation2 + $0x18] sm:$0xf]
    %v189 = vld [vmem:[#allocation2 + $0x1c] sm:$0xf]
    %v190 = vld [vmem:[#allocation2 + $0x20] sm:$0xf]
    %v191 = vld [vmem:[#allocation2 + $0x24] sm:$0xf]
    %v192 = vld [vmem:[#allocation2 + $0x28] sm:$0xf]
    %v193 = vld [vmem:[#allocation2 + $0x2c] sm:$0xf]
    %v194 = vld [vmem:[#allocation2 + $0x30] sm:$0xf]
    %v195 = vld [vmem:[#allocation2 + $0x34] sm:$0xf]
    %v196 = vld [vmem:[#allocation2 + $0x38] sm:$0xf]
    %v197 = vld [vmem:[#allocation2 + $0x3c] sm:$0xf]
    %v198 = vld [vmem:[#allocation2 + $0x40] sm:$0xf]
    %v199 = vld [vmem:[#allocation2 + $0x44] sm:$0xf]
    %v200 = vld [vmem:[#allocation2 + $0x48] sm:$0xf]
    %v201 = vld [vmem:[#allocation2 + $0x4c] sm:$0xf]
    %v202 = vld [vmem:[#allocation2 + $0x50] sm:$0xf]
    %v203 = vld [vmem:[#allocation2 + $0x54] sm:$0xf]
    %v204 = vld [vmem:[#allocation2 + $0x58] sm:$0xf]
    %v205 = vld [vmem:[#allocation2 + $0x5c] sm:$0xf]
    %v230 = vunpack.c.l.b16 %v182
    %v231 = vunpack.c.l.b16 %v183
    %v232 = vunpack.c.l.b16 %v184
    %v233 = vunpack.c.l.b16 %v185
    %v234 = vunpack.c.l.b16 %v186
    %v235 = vunpack.c.l.b16 %v187
    %v236 = vunpack.c.l.b16 %v188
    %v237 = vunpack.c.l.b16 %v189
    %v238 = vunpack.c.l.b16 %v190
    %v239 = vunpack.c.l.b16 %v191
    %v240 = vunpack.c.l.b16 %v192
    %v241 = vunpack.c.l.b16 %v193
    %v242 = vunpack.c.l.b16 %v194
    %v243 = vunpack.c.l.b16 %v195
    %v244 = vunpack.c.l.b16 %v196
    %v245 = vunpack.c.l.b16 %v197
    %v246 = vunpack.c.l.b16 %v198
    %v247 = vunpack.c.l.b16 %v199
    %v248 = vunpack.c.l.b16 %v200
    %v249 = vunpack.c.l.b16 %v201
    %v250 = vunpack.c.l.b16 %v202
    %v251 = vunpack.c.l.b16 %v203
    %v252 = vunpack.c.l.b16 %v204
    %v253 = vunpack.c.l.b16 %v205
    %v254 = vpack.c.b16 %v231, %v230
    %v255 = vpack.c.b16 %v233, %v232
    %v256 = vpack.c.b16 %v235, %v234
    %v257 = vpack.c.b16 %v237, %v236
    %v258 = vpack.c.b16 %v239, %v238
    %v259 = vpack.c.b16 %v241, %v240
    %v260 = vpack.c.b16 %v243, %v242
    %v261 = vpack.c.b16 %v245, %v244
    %v262 = vpack.c.b16 %v247, %v246
    %v263 = vpack.c.b16 %v249, %v248
    %v264 = vpack.c.b16 %v251, %v250
    %v265 = vpack.c.b16 %v253, %v252
    %v279 = vsel %vm173, %v179, 0
    %v282 = vsel %vm173, %v181, 0
    %284 = vmatpush.bf16.msra.mxu0 %v261
    %285 = vmatpush.bf16.msra.mxu0 %v260
    %286 = vmatpush.bf16.msra.mxu0 %v259
    %287 = vmatpush.bf16.msra.mxu0 %v258
    %288 = vmatpush.bf16.msra.mxu0 %v257
    %289 = vmatpush.bf16.msra.mxu0 %v256
    %290 = vmatpush.bf16.msra.mxu0 %v255
    %291 = vmatpush.bf16.msra.mxu0 %v254
    %292 = vmatmul.bf16.gmra.mxu0 %v178
    %v293 = vpop.f32.mrf.mxu0
    %v294 = vadd.f32 0.0, %v293
    %v295 = vpop.f32.mrf.mxu0
    %v296 = vadd.f32 0.0, %v295
    %297 = vmatmul.bf16.gmra.mxu0 %v180
    %v298 = vpop.f32.mrf.mxu0
    %v299 = vadd.f32 0.0, %v298
    %v300 = vpop.f32.mrf.mxu0
    %v301 = vadd.f32 0.0, %v300
    %302 = vdwg.mxu0
    %303 = vmatpush.bf16.msra.mxu0 0
    %304 = vmatpush.bf16.msra.mxu0 0
    %305 = vmatpush.bf16.msra.mxu0 0
    %306 = vmatpush.bf16.msra.mxu0 0
    %307 = vmatpush.bf16.msra.mxu0 %v265
    %308 = vmatpush.bf16.msra.mxu0 %v264
    %309 = vmatpush.bf16.msra.mxu0 %v263
    %310 = vmatpush.bf16.msra.mxu0 %v262
    %311 = vmatmul.bf16.gmra.mxu0 %v279
    %v312 = vpop.f32.mrf.mxu0
    %v313 = vadd.f32 %v294, %v312
    %v314 = vpop.f32.mrf.mxu0
    %v315 = vadd.f32 %v296, %v314
    %316 = vmatmul.bf16.gmra.mxu0 %v282
    %v317 = vpop.f32.mrf.mxu0
    %v318 = vadd.f32 %v299, %v317
    %v319 = vpop.f32.mrf.mxu0
    %v320 = vadd.f32 %v301, %v319
    %321 = vdwg.mxu0
    %v322 = vadd.f32 %v313, %v315
    %v323 = vadd.f32 %v322, %v318
    %v324 = vadd.f32 %v323, %v320
    %v325 = vrot.slane %v324, 4
    %v326 = vadd.f32 %v324, %v325
    %v327 = vrot.slane %v326, 2
    %v328 = vadd.f32 %v326, %v327
    %v329 = vrot.slane %v328, 1
    %v330 = vadd.f32 %v328, %v329
    %v331 = vmul.f32 %v313, %v313
    %v332 = vmul.f32 %v315, %v315
    %v333 = vmul.f32 %v318, %v318
    %v334 = vmul.f32 %v320, %v320
    %v335 = vadd.f32 %v331, %v332
    %v336 = vadd.f32 %v335, %v333
    %v337 = vadd.f32 %v336, %v334
    %v338 = vrot.slane %v337, 4
    %v339 = vadd.f32 %v337, %v338
    %v340 = vrot.slane %v339, 2
    %v341 = vadd.f32 %v339, %v340
    %v342 = vrot.slane %v341, 1
    %v343 = vadd.f32 %v341, %v342
    %vm344 = vcmask 1040384
    %v345 = vsel %vm344, %v330, %v343
    %v346 = vld [vmem:[%s3] sm:$0xff]
    %v347 = vld [vmem:[%s3 + $0x8] sm:$0xff]
    %v348 = vld [vmem:[%s3 + $0x10] sm:$0xff]
    %v349 = vld [vmem:[%s3 + $0x18] sm:$0xff]
    %v350 = vld [vmem:[%s3 + $0x20] sm:$0xff]
    %v351 = vld [vmem:[%s3 + $0x28] sm:$0xff]
    %v352 = vld [vmem:[%s3 + $0x30] sm:$0xff]
    %v353 = vld [vmem:[%s3 + $0x38] sm:$0xff]
    %v354 = vld [vmem:[%s3 + $0x40] sm:$0xff]
    %v355 = vld [vmem:[%s3 + $0x48] sm:$0xff]
    %v356 = vld [vmem:[%s3 + $0x50] sm:$0xff]
    %v357 = vld [vmem:[%s3 + $0x58] sm:$0xff]
    %v358 = vld [vmem:[%s3 + $0x60] sm:$0xff]
    %v359 = vld [vmem:[%s3 + $0x68] sm:$0xff]
    %v360 = vld [vmem:[%s3 + $0x70] sm:$0xff]
    %v361 = vld [vmem:[%s3 + $0x78] sm:$0xff]
    %362 = vmatpush.msra.mxu0 %v361
    %363 = vmatpush.msra.mxu0 %v360
    %364 = vmatpush.msra.mxu0 %v359
    %365 = vmatpush.msra.mxu0 %v358
    %366 = vmatpush.msra.mxu0 %v357
    %367 = vmatpush.msra.mxu0 %v356
    %368 = vmatpush.msra.mxu0 %v355
    %369 = vmatpush.msra.mxu0 %v354
    %370 = vmatpush.msra.mxu0 %v353
    %371 = vmatpush.msra.mxu0 %v352
    %372 = vmatpush.msra.mxu0 %v351
    %373 = vmatpush.msra.mxu0 %v350
    %374 = vmatpush.msra.mxu0 %v349
    %375 = vmatpush.msra.mxu0 %v348
    %376 = vmatpush.msra.mxu0 %v347
    %377 = vmatpush.msra.mxu0 %v346
    %378 = vmatmul.f32.gmra.mxu0 %v345
    %v379 = vpop.f32.mrf.mxu0
    %v380 = vadd.f32 0.0, %v379
    %381 = vdwg.mxu0
    %v382 = vmul.f32 %v380, 0.001953125
    %v383 = vmul.f32 %v382, %v382
    %v385 = vrot.slane %v383, 7
    %v387 = vsub.f32 %v382, %v385
    %v388 = vld [vmem:[%s7] sm:$0x1]
    %v389 = vadd.f32 %v387, 1e-05
    %v390 = vrsqrt.pop %v389
    %v391 = vmul.f32 %v390, %v389
    %v392 = vmul.f32 %v391, %v390
    %v393 = vmul.f32 0.5, %v392
    %v394 = vsub.f32 1.5, %v393
    %v395 = vmul.f32 %v390, %v394
    %vm396 = vweird.f32 %v389
    %vm397 = vweird.f32 %v390
    %vm398 = vmor %vm396, %vm397
    %v399 = vsel %vm398, %v390, %v395
    %v401 = vrot.slane %v399, 1
    %v403 = vmul.f32 %v388, %v401
    %v404 = vld [vmem:[%s7 + $0x1] sm:$0x1]
    %v405 = vmul.f32 %v382, %v403
    %v406 = vsub.f32 %v404, %v405
    %v408 = vrot.slane %v406, 7
    %v410 = vsel %vm344, %v403, %v408
    %v411 = vld [vmem:[%s4] sm:$0xff]
    %vm412 = vcmask 64512
    %v414 = vsel %vm412, %v410, 0
    %416 = vmatpush.msra.mxu0 0.0
    %417 = vmatpush.msra.mxu0 0.0
    %418 = vmatpush.msra.mxu0 0.0
    %419 = vmatpush.msra.mxu0 0.0
    %420 = vmatpush.msra.mxu0 0.0
    %421 = vmatpush.msra.mxu0 0.0
    %422 = vmatpush.msra.mxu0 0.0
    %423 = vmatpush.msra.mxu0 0.0
    %424 = vmatpush.msra.mxu0 0.0
    %425 = vmatpush.msra.mxu0 0.0
    %426 = vmatpush.msra.mxu0 0.0
    %427 = vmatpush.msra.mxu0 0.0
    %428 = vmatpush.msra.mxu0 0.0
    %429 = vmatpush.msra.mxu0 0.0
    %430 = vmatpush.msra.mxu0 0.0
    %431 = vmatpush.msra.mxu0 %v411
    %432 = vmatmul.f32.gmra.mxu0 %v414
    %v433 = vpop.f32.mrf.mxu0
    %v434 = vadd.f32 0.0, %v433
    %435 = vdwg.mxu0
    %v436 = vperm.slane %v434, 0
    %v437 = vmul.f32 %v313, %v436
    %v438 = vmul.f32 %v315, %v436
    %v439 = vmul.f32 %v318, %v436
    %v440 = vmul.f32 %v320, %v436
    %v441 = vperm.slane %v434, 1
    %v442 = vadd.f32 %v437, %v441
    %v443 = vadd.f32 %v438, %v441
    %v444 = vadd.f32 %v439, %v441
    %v445 = vadd.f32 %v440, %v441
    %v446 = vmax.f32 %v442, 0.0
    %v447 = vmax.f32 %v443, 0.0
    %v448 = vmax.f32 %v444, 0.0
    %v449 = vmax.f32 %v445, 0.0
    %v450 = vrot.slane %v446, 7
    %v451 = vrot.slane %v447, 7
    %v452 = vrot.slane %v448, 7
    %v453 = vrot.slane %v449, 7
    %v454 = vsel %vm119, %v452, %v453
    %v455 = vsel %vm119, %v451, %v452
    %v456 = vsel %vm119, %v450, %v451
    %v457 = vsel %vm119, %v453, %v450
    %v458 = vsel %vm128, %v457, 0.0
    %v459 = vsel %vm129, %v456, 0.0
    %v460 = vsel %vm130, %v455, 0.0
    %v461 = vsel %vm131, %v454, 0.0
    %v462 = vrot.slane %v446, 1
    %v463 = vrot.slane %v447, 1
    %v464 = vrot.slane %v448, 1
    %v465 = vrot.slane %v449, 1
    %v466 = vsel %vm140, %v464, %v465
    %v467 = vsel %vm140, %v463, %v464
    %v468 = vsel %vm140, %v462, %v463
    %v469 = vsel %vm140, %v465, %v462
    %v470 = vsel %vm149, %v468, 0.0
    %v471 = vsel %vm150, %v467, 0.0
    %v472 = vsel %vm151, %v466, 0.0
    %v473 = vsel %vm152, %v469, 0.0
    %v474 = vpack.c.bf16 %v459, %v458
    %v475 = vpack.c.bf16 %v447, %v446
    %v476 = vpack.c.bf16 %v471, %v470
    %v477 = vpack.c.bf16 %v461, %v460
    %v478 = vpack.c.bf16 %v449, %v448
    %v479 = vpack.c.bf16 %v473, %v472
    %v480 = vld [vmem:[%s2] sm:$0xf]
    %v481 = vld [vmem:[%s2 + $0x4] sm:$0xf]
    %v482 = vld [vmem:[%s2 + $0x8] sm:$0xf]
    %v483 = vld [vmem:[%s2 + $0xc] sm:$0xf]
    %v484 = vld [vmem:[%s2 + $0x10] sm:$0xf]
    %v485 = vld [vmem:[%s2 + $0x14] sm:$0xf]
    %v486 = vld [vmem:[%s2 + $0x18] sm:$0xf]
    %v487 = vld [vmem:[%s2 + $0x1c] sm:$0xf]
    %v488 = vld [vmem:[%s2 + $0x20] sm:$0xf]
    %v489 = vld [vmem:[%s2 + $0x24] sm:$0xf]
    %v490 = vld [vmem:[%s2 + $0x28] sm:$0xf]
    %v491 = vld [vmem:[%s2 + $0x2c] sm:$0xf]
    %v492 = vld [vmem:[%s2 + $0x30] sm:$0xf]
    %v493 = vld [vmem:[%s2 + $0x34] sm:$0xf]
    %v494 = vld [vmem:[%s2 + $0x38] sm:$0xf]
    %v495 = vld [vmem:[%s2 + $0x3c] sm:$0xf]
    %v496 = vld [vmem:[%s2 + $0x40] sm:$0xf]
    %v497 = vld [vmem:[%s2 + $0x44] sm:$0xf]
    %v498 = vld [vmem:[%s2 + $0x48] sm:$0xf]
    %v499 = vld [vmem:[%s2 + $0x4c] sm:$0xf]
    %v500 = vld [vmem:[%s2 + $0x50] sm:$0xf]
    %v501 = vld [vmem:[%s2 + $0x54] sm:$0xf]
    %v502 = vld [vmem:[%s2 + $0x58] sm:$0xf]
    %v503 = vld [vmem:[%s2 + $0x5c] sm:$0xf]
    %v504 = vld [vmem:[%s2 + $0x60] sm:$0xf]
    %v505 = vld [vmem:[%s2 + $0x64] sm:$0xf]
    %v506 = vld [vmem:[%s2 + $0x68] sm:$0xf]
    %v507 = vld [vmem:[%s2 + $0x6c] sm:$0xf]
    %v508 = vld [vmem:[%s2 + $0x70] sm:$0xf]
    %v509 = vld [vmem:[%s2 + $0x74] sm:$0xf]
    %v510 = vld [vmem:[%s2 + $0x78] sm:$0xf]
    %v511 = vld [vmem:[%s2 + $0x7c] sm:$0xf]
    %v512 = vld [vmem:[%s2 + $0x80] sm:$0xf]
    %v513 = vld [vmem:[%s2 + $0x84] sm:$0xf]
    %v514 = vld [vmem:[%s2 + $0x88] sm:$0xf]
    %v515 = vld [vmem:[%s2 + $0x8c] sm:$0xf]
    %v516 = vld [vmem:[%s2 + $0x90] sm:$0xf]
    %v517 = vld [vmem:[%s2 + $0x94] sm:$0xf]
    %v518 = vld [vmem:[%s2 + $0x98] sm:$0xf]
    %v519 = vld [vmem:[%s2 + $0x9c] sm:$0xf]
    %v520 = vld [vmem:[%s2 + $0xa0] sm:$0xf]
    %v521 = vld [vmem:[%s2 + $0xa4] sm:$0xf]
    %v522 = vld [vmem:[%s2 + $0xa8] sm:$0xf]
    %v523 = vld [vmem:[%s2 + $0xac] sm:$0xf]
    %v524 = vld [vmem:[%s2 + $0xb0] sm:$0xf]
    %v525 = vld [vmem:[%s2 + $0xb4] sm:$0xf]
    %v526 = vld [vmem:[%s2 + $0xb8] sm:$0xf]
    %v527 = vld [vmem:[%s2 + $0xbc] sm:$0xf]
    %v576 = vunpack.c.l.b16 %v480
    %v577 = vunpack.c.l.b16 %v481
    %v578 = vunpack.c.l.b16 %v482
    %v579 = vunpack.c.l.b16 %v483
    %v580 = vunpack.c.l.b16 %v484
    %v581 = vunpack.c.l.b16 %v485
    %v582 = vunpack.c.l.b16 %v486
    %v583 = vunpack.c.l.b16 %v487
    %v584 = vunpack.c.l.b16 %v488
    %v585 = vunpack.c.l.b16 %v489
    %v586 = vunpack.c.l.b16 %v490
    %v587 = vunpack.c.l.b16 %v491
    %v588 = vunpack.c.l.b16 %v492
    %v589 = vunpack.c.l.b16 %v493
    %v590 = vunpack.c.l.b16 %v494
    %v591 = vunpack.c.l.b16 %v495
    %v592 = vunpack.c.l.b16 %v496
    %v593 = vunpack.c.l.b16 %v497
    %v594 = vunpack.c.l.b16 %v498
    %v595 = vunpack.c.l.b16 %v499
    %v596 = vunpack.c.l.b16 %v500
    %v597 = vunpack.c.l.b16 %v501
    %v598 = vunpack.c.l.b16 %v502
    %v599 = vunpack.c.l.b16 %v503
    %v600 = vunpack.c.l.b16 %v504
    %v601 = vunpack.c.l.b16 %v505
    %v602 = vunpack.c.l.b16 %v506
    %v603 = vunpack.c.l.b16 %v507
    %v604 = vunpack.c.l.b16 %v508
    %v605 = vunpack.c.l.b16 %v509
    %v606 = vunpack.c.l.b16 %v510
    %v607 = vunpack.c.l.b16 %v511
    %v608 = vunpack.c.l.b16 %v512
    %v609 = vunpack.c.l.b16 %v513
    %v610 = vunpack.c.l.b16 %v514
    %v611 = vunpack.c.l.b16 %v515
    %v612 = vunpack.c.l.b16 %v516
    %v613 = vunpack.c.l.b16 %v517
    %v614 = vunpack.c.l.b16 %v518
    %v615 = vunpack.c.l.b16 %v519
    %v616 = vunpack.c.l.b16 %v520
    %v617 = vunpack.c.l.b16 %v521
    %v618 = vunpack.c.l.b16 %v522
    %v619 = vunpack.c.l.b16 %v523
    %v620 = vunpack.c.l.b16 %v524
    %v621 = vunpack.c.l.b16 %v525
    %v622 = vunpack.c.l.b16 %v526
    %v623 = vunpack.c.l.b16 %v527
    %v624 = vpack.c.b16 %v577, %v576
    %v625 = vpack.c.b16 %v579, %v578
    %v626 = vpack.c.b16 %v581, %v580
    %v627 = vpack.c.b16 %v583, %v582
    %v628 = vpack.c.b16 %v585, %v584
    %v629 = vpack.c.b16 %v587, %v586
    %v630 = vpack.c.b16 %v589, %v588
    %v631 = vpack.c.b16 %v591, %v590
    %v632 = vpack.c.b16 %v593, %v592
    %v633 = vpack.c.b16 %v595, %v594
    %v634 = vpack.c.b16 %v597, %v596
    %v635 = vpack.c.b16 %v599, %v598
    %v636 = vpack.c.b16 %v601, %v600
    %v637 = vpack.c.b16 %v603, %v602
    %v638 = vpack.c.b16 %v605, %v604
    %v639 = vpack.c.b16 %v607, %v606
    %v640 = vpack.c.b16 %v609, %v608
    %v641 = vpack.c.b16 %v611, %v610
    %v642 = vpack.c.b16 %v613, %v612
    %v643 = vpack.c.b16 %v615, %v614
    %v644 = vpack.c.b16 %v617, %v616
    %v645 = vpack.c.b16 %v619, %v618
    %v646 = vpack.c.b16 %v621, %v620
    %v647 = vpack.c.b16 %v623, %v622
    %672 = vmatpush.bf16.msra.mxu0 %v631
    %673 = vmatpush.bf16.msra.mxu0 %v630
    %674 = vmatpush.bf16.msra.mxu0 %v629
    %675 = vmatpush.bf16.msra.mxu0 %v628
    %676 = vmatpush.bf16.msra.mxu0 %v627
    %677 = vmatpush.bf16.msra.mxu0 %v626
    %678 = vmatpush.bf16.msra.mxu0 %v625
    %679 = vmatpush.bf16.msra.mxu0 %v624
    %680 = vmatmul.bf16.gmra.mxu0 %v474
    %v681 = vpop.f32.mrf.mxu0
    %v682 = vadd.f32 0.0, %v681
    %v683 = vpop.f32.mrf.mxu0
    %v684 = vadd.f32 0.0, %v683
    %685 = vmatmul.bf16.gmra.mxu0 %v477
    %v686 = vpop.f32.mrf.mxu0
    %v687 = vadd.f32 0.0, %v686
    %v688 = vpop.f32.mrf.mxu0
    %v689 = vadd.f32 0.0, %v688
    %690 = vdwg.mxu0
    %691 = vmatpush.bf16.msra.mxu0 %v639
    %692 = vmatpush.bf16.msra.mxu0 %v638
    %693 = vmatpush.bf16.msra.mxu0 %v637
    %694 = vmatpush.bf16.msra.mxu0 %v636
    %695 = vmatpush.bf16.msra.mxu0 %v635
    %696 = vmatpush.bf16.msra.mxu0 %v634
    %697 = vmatpush.bf16.msra.mxu0 %v633
    %698 = vmatpush.bf16.msra.mxu0 %v632
    %699 = vmatmul.bf16.gmra.mxu0 %v475
    %v700 = vpop.f32.mrf.mxu0
    %v701 = vadd.f32 %v682, %v700
    %v702 = vpop.f32.mrf.mxu0
    %v703 = vadd.f32 %v684, %v702
    %704 = vmatmul.bf16.gmra.mxu0 %v478
    %v705 = vpop.f32.mrf.mxu0
    %v706 = vadd.f32 %v687, %v705
    %v707 = vpop.f32.mrf.mxu0
    %v708 = vadd.f32 %v689, %v707
    %709 = vdwg.mxu0
    %710 = vmatpush.bf16.msra.mxu0 %v647
    %711 = vmatpush.bf16.msra.mxu0 %v646
    %712 = vmatpush.bf16.msra.mxu0 %v645
    %713 = vmatpush.bf16.msra.mxu0 %v644
    %714 = vmatpush.bf16.msra.mxu0 %v643
    %715 = vmatpush.bf16.msra.mxu0 %v642
    %716 = vmatpush.bf16.msra.mxu0 %v641
    %717 = vmatpush.bf16.msra.mxu0 %v640
    %718 = vmatmul.bf16.gmra.mxu0 %v476
    %v719 = vpop.f32.mrf.mxu0
    %v720 = vadd.f32 %v701, %v719
    %v721 = vpop.f32.mrf.mxu0
    %v722 = vadd.f32 %v703, %v721
    %723 = vmatmul.bf16.gmra.mxu0 %v479
    %v724 = vpop.f32.mrf.mxu0
    %v725 = vadd.f32 %v706, %v724
    %v726 = vpop.f32.mrf.mxu0
    %v727 = vadd.f32 %v708, %v726
    %728 = vdwg.mxu0
    %v729 = vadd.f32 %v720, %v722
    %v730 = vadd.f32 %v729, %v725
    %v731 = vadd.f32 %v730, %v727
    %v732 = vrot.slane %v731, 4
    %v733 = vadd.f32 %v731, %v732
    %v734 = vrot.slane %v733, 2
    %v735 = vadd.f32 %v733, %v734
    %v736 = vrot.slane %v735, 1
    %v737 = vadd.f32 %v735, %v736
    %v738 = vmul.f32 %v720, %v720
    %v739 = vmul.f32 %v722, %v722
    %v740 = vmul.f32 %v725, %v725
    %v741 = vmul.f32 %v727, %v727
    %v742 = vadd.f32 %v738, %v739
    %v743 = vadd.f32 %v742, %v740
    %v744 = vadd.f32 %v743, %v741
    %v745 = vrot.slane %v744, 4
    %v746 = vadd.f32 %v744, %v745
    %v747 = vrot.slane %v746, 2
    %v748 = vadd.f32 %v746, %v747
    %v749 = vrot.slane %v748, 1
    %v750 = vadd.f32 %v748, %v749
    %v751 = vsel %vm344, %v737, %v750
    %v752 = vld [vmem:[%s5] sm:$0xff]
    %v753 = vld [vmem:[%s5 + $0x8] sm:$0xff]
    %v754 = vld [vmem:[%s5 + $0x10] sm:$0xff]
    %v755 = vld [vmem:[%s5 + $0x18] sm:$0xff]
    %v756 = vld [vmem:[%s5 + $0x20] sm:$0xff]
    %v757 = vld [vmem:[%s5 + $0x28] sm:$0xff]
    %v758 = vld [vmem:[%s5 + $0x30] sm:$0xff]
    %v759 = vld [vmem:[%s5 + $0x38] sm:$0xff]
    %v760 = vld [vmem:[%s5 + $0x40] sm:$0xff]
    %v761 = vld [vmem:[%s5 + $0x48] sm:$0xff]
    %v762 = vld [vmem:[%s5 + $0x50] sm:$0xff]
    %v763 = vld [vmem:[%s5 + $0x58] sm:$0xff]
    %v764 = vld [vmem:[%s5 + $0x60] sm:$0xff]
    %v765 = vld [vmem:[%s5 + $0x68] sm:$0xff]
    %v766 = vld [vmem:[%s5 + $0x70] sm:$0xff]
    %v767 = vld [vmem:[%s5 + $0x78] sm:$0xff]
    %768 = vmatpush.msra.mxu0 %v767
    %769 = vmatpush.msra.mxu0 %v766
    %770 = vmatpush.msra.mxu0 %v765
    %771 = vmatpush.msra.mxu0 %v764
    %772 = vmatpush.msra.mxu0 %v763
    %773 = vmatpush.msra.mxu0 %v762
    %774 = vmatpush.msra.mxu0 %v761
    %775 = vmatpush.msra.mxu0 %v760
    %776 = vmatpush.msra.mxu0 %v759
    %777 = vmatpush.msra.mxu0 %v758
    %778 = vmatpush.msra.mxu0 %v757
    %779 = vmatpush.msra.mxu0 %v756
    %780 = vmatpush.msra.mxu0 %v755
    %781 = vmatpush.msra.mxu0 %v754
    %782 = vmatpush.msra.mxu0 %v753
    %783 = vmatpush.msra.mxu0 %v752
    %784 = vmatmul.f32.gmra.mxu0 %v751
    %v785 = vpop.f32.mrf.mxu0
    %v786 = vadd.f32 0.0, %v785
    %787 = vdwg.mxu0
    %v788 = vmul.f32 %v786, 0.001953125
    %v789 = vmul.f32 %v788, %v788
    %v791 = vrot.slane %v789, 7
    %v793 = vsub.f32 %v788, %v791
    %v794 = vld [vmem:[%s8] sm:$0x1]
    %v795 = vadd.f32 %v793, 1e-05
    %v796 = vrsqrt.pop %v795
    %v797 = vmul.f32 %v796, %v795
    %v798 = vmul.f32 %v797, %v796
    %v799 = vmul.f32 0.5, %v798
    %v800 = vsub.f32 1.5, %v799
    %v801 = vmul.f32 %v796, %v800
    %vm802 = vweird.f32 %v795
    %vm803 = vweird.f32 %v796
    %vm804 = vmor %vm802, %vm803
    %v805 = vsel %vm804, %v796, %v801
    %v807 = vrot.slane %v805, 1
    %v809 = vmul.f32 %v794, %v807
    %v810 = vld [vmem:[%s8 + $0x1] sm:$0x1]
    %v811 = vmul.f32 %v788, %v809
    %v812 = vsub.f32 %v810, %v811
    %v814 = vrot.slane %v812, 7
    %v816 = vsel %vm344, %v809, %v814
    %v817 = vld [vmem:[%s6] sm:$0xff]
    %v819 = vsel %vm412, %v816, 0
    %821 = vmatpush.msra.mxu0 0.0
    %822 = vmatpush.msra.mxu0 0.0
    %823 = vmatpush.msra.mxu0 0.0
    %824 = vmatpush.msra.mxu0 0.0
    %825 = vmatpush.msra.mxu0 0.0
    %826 = vmatpush.msra.mxu0 0.0
    %827 = vmatpush.msra.mxu0 0.0
    %828 = vmatpush.msra.mxu0 0.0
    %829 = vmatpush.msra.mxu0 0.0
    %830 = vmatpush.msra.mxu0 0.0
    %831 = vmatpush.msra.mxu0 0.0
    %832 = vmatpush.msra.mxu0 0.0
    %833 = vmatpush.msra.mxu0 0.0
    %834 = vmatpush.msra.mxu0 0.0
    %835 = vmatpush.msra.mxu0 0.0
    %836 = vmatpush.msra.mxu0 %v817
    %837 = vmatmul.f32.gmra.mxu0 %v819
    %v838 = vpop.f32.mrf.mxu0
    %v839 = vadd.f32 0.0, %v838
    %840 = vdwg.mxu0
    %v841 = vperm.slane %v839, 0
    %v842 = vmul.f32 %v720, %v841
    %v843 = vmul.f32 %v722, %v841
    %v844 = vmul.f32 %v725, %v841
    %v845 = vmul.f32 %v727, %v841
    %v846 = vperm.slane %v839, 1
    %v847 = vadd.f32 %v842, %v846
    %v848 = vadd.f32 %v843, %v846
    %v849 = vadd.f32 %v844, %v846
    %v850 = vadd.f32 %v845, %v846
    %v851 = vmax.f32 %v847, 0.0
    %v852 = vmax.f32 %v848, 0.0
    %v853 = vmax.f32 %v849, 0.0
    %v854 = vmax.f32 %v850, 0.0
    %855 = vst [vmem:[#allocation5] sm:$0xff] %v851
    %856 = vst [vmem:[#allocation5 + $0x8] sm:$0xff] %v852
    %857 = vst [vmem:[#allocation5 + $0x10] sm:$0xff] %v853
    %858 = vst [vmem:[#allocation5 + $0x18] sm:$0xff] %v854
    // Predicated region
    $region42: #{tpu_custom_call.1} parent=1 // pred_check
      _
    $region43: #{tpu_custom_call.1} parent=1 // pred_check_branch
      %860 = sbr.rel (0) target = $region45
    $region44: #{tpu_custom_call.1} parent=1 // pred_region
      %862 = vsyncadd [#allocation4], 0
      %s863 = sshll.u32 [#allocation5], 4
      %s864 = int_to_ptr.vmem [resolvable:$true] %s863
      %s865 = sshll.u32 %s9, 4
      %s866 = int_to_ptr.hbm [resolvable:$true] %s865
      %871 = dma.vmem_to_hbm [thread:$0]  %s864, 512, %s866, [#allocation4], 128, 128, 8
    $region45: #{tpu_custom_call.1} parent=1 // pred_fallthru
      _
    // Predicated region
    $region46: #{tpu_custom_call.1} parent=1 // pred_check
      _
    $region47: #{tpu_custom_call.1} parent=1 // pred_check_branch
      %873 = sbr.rel (0) target = $region49
    $region48: #{tpu_custom_call.1} parent=1 // pred_region
      %875 = dma.done [#allocation4], 512
    $region49: #{tpu_custom_call.1} parent=1 // pred_fallthru
      _
    %876 = vsyncpa [#allocation3], 1
    %877 = vsyncpa [#allocation4], 1

</llo_original>
